<compile_context>
chip_gen: v6e
topology: v6e:2x2x1
jax: 0.10.0
libtpu: 0.0.40
codegen_flags: <defaults>
</compile_context>

<pallas_src>
import jax
import jax.numpy as jnp
from jax import lax
from jax.experimental import pallas as pl
from jax.experimental.pallas import tpu as pltpu

_LANE = 128                      # lane width (last dim of every block)
_TARGET_BLOCK_BYTES = 4 << 20    # ~4 MiB per input block (amortize per-step overhead)
_BYPASS_NUMEL = 1 << 15          # below this a plain fused jnp reduce already hits roofline


def _num_tensorcores() -> int:
    """TensorCores a single Mosaic kernel can shard a 'parallel' grid axis over."""
    try:
        kind = jax.devices()[0].device_kind.lower()
    except Exception:
        return 1
    # Dual-TC / megacore chips. Single-TC chips (v5e, v6e) get 1: a 2-way split
    # there is a pure loop split and can force a redundant duplicated-block DMA.
    # TODO(synk): on v7x, consider pltpu.CORE_PARALLEL for the leading axis if
    # "parallel" dimension_semantics does not actually shard across the 2 TCs.
    return 2 if any(tag in kind for tag in ("v4", "v5p", "v7")) else 1


def _make_sse_kernel(rows: int, block_rows: int, inner_blocks: int,
                     total_blocks: int, needs_mask: bool):
    """SSE kernel over a (rows, 128) slab streamed in (block_rows, 128) blocks."""

    def kernel(p_ref, t_ref, o_ref, acc_ref):
        i = pl.program_id(1)                      # sequential row-block axis

        @pl.when(i == 0)
        def _():
            acc_ref[...] = jnp.zeros_like(acc_ref)

        d = p_ref[...].astype(jnp.float32) - t_ref[...].astype(jnp.float32)
        sq = d * d

        def _accumulate(vals):
            # Fold the block onto a vreg-shaped (8, 128) accumulator: same VALU
            # add count, but the accumulator read-modify-write is only 4 KiB.
            acc_ref[...] += vals.reshape(-1, 8, _LANE).sum(axis=0)

        if needs_mask:
            blk = pl.program_id(0) * inner_blocks + i   # logical (unclamped) block id

            # Only the edge block and clamped duplicate blocks (from the core
            # split) pay for the iota/compare/select.
            @pl.when(blk < total_blocks - 1)
            def _():
                _accumulate(sq)

            @pl.when(blk >= total_blocks - 1)
            def _():
                row_ids = blk * block_rows + lax.broadcasted_iota(
                    jnp.int32, (block_rows, _LANE), 0)
                _accumulate(jnp.where(row_ids < rows, sq, jnp.float32(0.0)))
        else:
            _accumulate(sq)

        @pl.when(i == pl.num_programs(1) - 1)
        def _():
            # One cross-lane (XLU) reduce + SMEM scalar store per core.
            o_ref[0, 0] = jnp.sum(acc_ref[...])

    return kernel


def _pallas_sse(pred: jax.Array, target: jax.Array,
                *, target_block_bytes: int = _TARGET_BLOCK_BYTES) -> jax.Array:
    """Sum of squared errors via a Pallas TPU streaming kernel. Returns f32 scalar."""
    assert pred.shape == target.shape, (pred.shape, target.shape)
    n = pred.size
    flat_p = pred.reshape(-1)   # free reshape; keep native dtype (bf16 stays bf16) over HBM
    flat_t = target.reshape(-1)

    itemsizes = (jnp.dtype(pred.dtype).itemsize, jnp.dtype(target.dtype).itemsize)
    max_itemsize = max(itemsizes)
    # Sublane packing factor: 8 rows for 32-bit, 16 for 16-bit, 32 for 8-bit dtypes.
    packing = max(8 * max(1, 4 // s) for s in itemsizes)

    chunk = packing * _LANE
    n_kernel = (n // chunk) * chunk       # aligned prefix handled by the kernel

    # Ragged tail (< packing*128 elements): tiny fused jnp reduce in the wrapper
    # (replaces the old jnp.pad fallback which copied both full inputs in HBM).
    tail_sse = jnp.float32(0.0)
    if n_kernel < n:
        tp = flat_p[n_kernel:].astype(jnp.float32)
        tt = flat_t[n_kernel:].astype(jnp.float32)
        tail_sse = jnp.sum((tp - tt) ** 2)
    if n_kernel == 0:
        return tail_sse

    rows = n_kernel // _LANE              # multiple of `packing`
    p2 = flat_p[:n_kernel].reshape(rows, _LANE)
    t2 = flat_t[:n_kernel].reshape(rows, _LANE)

    # Dtype-aware block size targeting ~4 MiB per input block, never larger
    # than the slab itself and always a multiple of the sublane packing.
    target_rows = max(packing,
                      (target_block_bytes // (max_itemsize * _LANE)) // packing * packing)
    block_rows = min(rows, target_rows)

    total_blocks = pl.cdiv(rows, block_rows)
    ncores = min(_num_tensorcores(), total_blocks)
    inner = pl.cdiv(total_blocks, ncores)
    needs_mask = (ncores * inner * block_rows) != rows
    assert rows + block_rows < 2**31, "int32 row ids in the mask path would overflow"

    def in_index_map(c, i):
        blk = c * inner + i
        # Clamp logically-OOB (duplicate) blocks in-bounds; masked to 0 in-kernel.
        return (jnp.minimum(blk, total_blocks - 1), 0)

    kernel = _make_sse_kernel(rows, block_rows, inner, total_blocks, needs_mask)

    # 2 inputs x 2 pipeline buffers x block + vreg accumulator + headroom;
    # explicit limit so the 4 MiB blocks also fit under v5e's 16 MiB default.
    block_bytes = block_rows * _LANE * max_itemsize
    vmem_limit = int(min(max(4 * block_bytes + (2 << 20), 16 << 20), 48 << 20))

    partials = pl.pallas_call(
        kernel,
        out_shape=jax.ShapeDtypeStruct((ncores, 1), jnp.float32),
        grid_spec=pltpu.PrefetchScalarGridSpec(
            num_scalar_prefetch=0,
            grid=(ncores, inner),
            in_specs=[
                # TODO(synk): sweep pipeline_mode=pl.Buffered(3) on v7x if profiling
                # still shows exposed DMA between the enlarged steps.
                pl.BlockSpec((block_rows, _LANE), in_index_map),
                pl.BlockSpec((block_rows, _LANE), in_index_map),
            ],
            out_specs=pl.BlockSpec((1, 1), lambda c, i: (c, 0),
                                   memory_space=pltpu.SMEM),
            scratch_shapes=[pltpu.VMEM((8, _LANE), jnp.float32)],
        ),
        compiler_params=pltpu.CompilerParams(
            dimension_semantics=("parallel", "arbitrary"),
            vmem_limit_bytes=vmem_limit),
    )(p2, t2)

    return jnp.sum(partials) + tail_sse


def pallas_mse_loss(pred: jax.Array, target: jax.Array,
                    reduction: str = "mean") -> jax.Array:
    if reduction not in ("mean", "sum"):
        raise ValueError(f"unsupported reduction: {reduction}")
    if pred.size < _BYPASS_NUMEL:
        # Launch + pipeline-warmup overhead dwarfs the work for tiny tensors;
        # XLA's fused reduce is already at the roofline there.
        d = pred.astype(jnp.float32) - target.astype(jnp.float32)
        sse = jnp.sum(d * d)
    else:
        sse = _pallas_sse(pred, target)
    if reduction == "mean":
        return sse / jnp.float32(pred.size)
    return sse


class DDPMLoss:
    """JAX/Pallas port of the PyTorch DDPMLoss module.

    No learnable parameters; `samples` and `labels` are accepted for API parity
    but (as in the PyTorch forward) are not used in the computation.
    """

    def __init__(self, contacts_weight: float = 1.0, reduction: str = "mean"):
        self.reduction = reduction
        self.contacts_weight = contacts_weight

    def __call__(self, samples, labels, model_output):
        if isinstance(model_output, dict):
            # TODO(synk): the two large-tensor losses could be fused into one
            # pallas_call to save a launch; the small-size bypass already covers
            # the tiny-tensor case where the launch overhead matters most.
            return {
                "udf_mse": pallas_mse_loss(
                    model_output["udf"][0], model_output["udf"][1],
                    reduction=self.reduction),
                "contacts_mse": self.contacts_weight * pallas_mse_loss(
                    model_output["contacts"][0], model_output["contacts"][1],
                    reduction=self.reduction),
            }
        else:
            return {
                "udf_mse": pallas_mse_loss(
                    model_output[0], model_output[1],
                    reduction=self.reduction),
            }


if __name__ == "__main__":
    key = jax.random.PRNGKey(0)
    ks = jax.random.split(key, 10)

    # Small NCHW-style shapes consistent with a diffusion model forward.
    B, C, H, W = 2, 4, 16, 16
    samples = jax.random.normal(ks[0], (B, C, H, W), jnp.float32)  # unused by loss
    labels = jax.random.normal(ks[1], (B, C, H, W), jnp.float32)   # unused by loss

    pred = jax.random.normal(ks[2], (B, C, H, W), jnp.float32)
    target = jax.random.normal(ks[3], (B, C, H, W), jnp.float32)

    loss_fn = DDPMLoss(contacts_weight=2.0, reduction="mean")

    # 1) Tuple path (tiny -> bypass path; semantics check).
    out_tuple = loss_fn(samples, labels, (pred, target))
    jax.block_until_ready(out_tuple["udf_mse"])
    ref = jnp.mean((pred - target) ** 2)
    assert jnp.allclose(out_tuple["udf_mse"], ref, rtol=1e-5, atol=1e-6), (
        out_tuple["udf_mse"], ref)

    # 2) Dict path.
    udf_p = jax.random.normal(ks[4], (B, C, H, W), jnp.float32)
    udf_t = jax.random.normal(ks[5], (B, C, H, W), jnp.float32)
    contacts_p = pred[:, :1]
    contacts_t = target[:, :1]
    out_dict = loss_fn(samples, labels,
                       {"udf": (udf_p, udf_t), "contacts": (contacts_p, contacts_t)})
    jax.block_until_ready(out_dict["contacts_mse"])
    ref_udf = jnp.mean((udf_p - udf_t) ** 2)
    ref_con = 2.0 * jnp.mean((contacts_p - contacts_t) ** 2)
    assert jnp.allclose(out_dict["udf_mse"], ref_udf, rtol=1e-5, atol=1e-6)
    assert jnp.allclose(out_dict["contacts_mse"], ref_con, rtol=1e-5, atol=1e-6)

    # 3) Pallas kernel, single-block unmasked path, on the same small inputs.
    got_sse = _pallas_sse(pred, target)
    jax.block_until_ready(got_sse)
    ref_sse = jnp.sum((pred - target) ** 2)
    assert jnp.allclose(got_sse, ref_sse, rtol=1e-5, atol=1e-3), (got_sse, ref_sse)

    # 4) Multi-block / partial-edge-block mask path (and dual-core split on
    #    dual-TC chips) by shrinking the block cap: rows=72, block_rows=16.
    a = jax.random.normal(ks[6], (2, 3, 13, 128), jnp.float32)
    b = jax.random.normal(ks[7], (2, 3, 13, 128), jnp.float32)
    got4 = _pallas_sse(a, b, target_block_bytes=16 * _LANE * 4)
    jax.block_until_ready(got4)
    ref4 = jnp.sum((a - b) ** 2)
    assert jnp.allclose(got4, ref4, rtol=1e-5, atol=1e-2), (got4, ref4)

    # 5) bf16 inputs through the public API kernel path (no wrapper upcast).
    p_bf = jax.random.normal(ks[8], (2, 8, 16, 128), jnp.float32).astype(jnp.bfloat16)
    t_bf = jax.random.normal(ks[9], (2, 8, 16, 128), jnp.float32).astype(jnp.bfloat16)
    got_bf = pallas_mse_loss(p_bf, t_bf)
    jax.block_until_ready(got_bf)
    ref_bf = jnp.mean((p_bf.astype(jnp.float32) - t_bf.astype(jnp.float32)) ** 2)
    assert jnp.allclose(got_bf, ref_bf, rtol=1e-4, atol=1e-5), (got_bf, ref_bf)

    # 6) f32 through the public API kernel path (at the bypass threshold).
    p6 = jax.random.normal(ks[8], (4, 4, 32, 64), jnp.float32)
    t6 = jax.random.normal(ks[9], (4, 4, 32, 64), jnp.float32)
    got6 = pallas_mse_loss(p6, t6)
    jax.block_until_ready(got6)
    ref6 = jnp.mean((p6 - t6) ** 2)
    assert jnp.allclose(got6, ref6, rtol=1e-5, atol=1e-6), (got6, ref6)

    # 7) Misaligned numel: kernel on aligned prefix + jnp ragged tail (no pad copy).
    a7 = jax.random.normal(ks[6], (3, 5, 113), jnp.float32)
    b7 = jax.random.normal(ks[7], (3, 5, 113), jnp.float32)
    got7 = _pallas_sse(a7, b7)
    jax.block_until_ready(got7)
    ref7 = jnp.sum((a7 - b7) ** 2)
    assert jnp.allclose(got7, ref7, rtol=1e-5, atol=1e-2), (got7, ref7)

    print("KERNEL_OK")
</pallas_src>

<mosaic_0001>
module attributes {stable_mosaic.version = 11 : i64} {
  func.func @kernel(%arg0: i32, %arg1: i32, %arg2: memref<16x128xf32, #tpu.memory_space<vmem>>, %arg3: memref<16x128xf32, #tpu.memory_space<vmem>>, %arg4: memref<1x1xf32, #tpu.memory_space<smem>>, %arg5: memref<8x128xf32, #tpu.memory_space<vmem>>) attributes {dimension_semantics = [#tpu.dimension_semantics<parallel>, #tpu.dimension_semantics<arbitrary>], iteration_bounds = array<i64: 1, 1>, scalar_prefetch = 0 : i64, scratch_operands = 1 : i64, tpu.core_type = #tpu.core_type<tc>, window_params = [{transform_indices = @transform_0, window_bounds = array<i64: 16, 128>}, {transform_indices = @transform_1, window_bounds = array<i64: 16, 128>}, {transform_indices = @transform_2, window_bounds = array<i64: 1, 1>}]} {
    %c0_i32 = arith.constant 0 : i32
    %0 = arith.cmpi eq, %arg1, %c0_i32 : i32
    %1 = arith.extui %0 : i1 to i32
    %c0_i32_0 = arith.constant 0 : i32
    %2 = arith.cmpi ne, %1, %c0_i32_0 : i32
    scf.if %2 {
      %cst_10 = arith.constant 0.000000e+00 : f32
      %15 = vector.broadcast %cst_10 : f32 to vector<8x128xf32>
      %c0_11 = arith.constant 0 : index
      %c0_12 = arith.constant 0 : index
      %16 = vector.load %arg5[%c0_11, %c0_12] : memref<8x128xf32, #tpu.memory_space<vmem>>, vector<8x128xf32>
      tpu.vector_store %arg5[%c0_11, %c0_12], %15 {strides = array<i32>} : memref<8x128xf32, #tpu.memory_space<vmem>>, vector<8x128xf32>,
    } else {
    }
    %c0 = arith.constant 0 : index
    %c0_1 = arith.constant 0 : index
    %3 = vector.load %arg2[%c0, %c0_1] : memref<16x128xf32, #tpu.memory_space<vmem>>, vector<16x128xf32>
    %c0_2 = arith.constant 0 : index
    %c0_3 = arith.constant 0 : index
    %4 = vector.load %arg3[%c0_2, %c0_3] : memref<16x128xf32, #tpu.memory_space<vmem>>, vector<16x128xf32>
    %5 = arith.subf %3, %4 : vector<16x128xf32>
    %6 = arith.mulf %5, %5 : vector<16x128xf32>
    %c0_4 = arith.constant 0 : index
    %c0_5 = arith.constant 0 : index
    %7 = vector.load %arg5[%c0_4, %c0_5] : memref<8x128xf32, #tpu.memory_space<vmem>>, vector<8x128xf32>
    %8 = vector.shape_cast %6 : vector<16x128xf32> to vector<2x8x128xf32>
    %cst = arith.constant dense<0.000000e+00> : vector<8x128xf32>
    %9 = vector.multi_reduction <add>, %8, %cst [0] : vector<2x8x128xf32> to vector<8x128xf32>
    %10 = arith.addf %7, %9 : vector<8x128xf32>
    %c0_6 = arith.constant 0 : index
    %c0_7 = arith.constant 0 : index
    %11 = vector.load %arg5[%c0_6, %c0_7] : memref<8x128xf32, #tpu.memory_space<vmem>>, vector<8x128xf32>
    tpu.vector_store %arg5[%c0_6, %c0_7], %10 {strides = array<i32>} : memref<8x128xf32, #tpu.memory_space<vmem>>, vector<8x128xf32>,
    %c0_i32_8 = arith.constant 0 : i32
    %12 = arith.cmpi eq, %arg1, %c0_i32_8 : i32
    %13 = arith.extui %12 : i1 to i32
    %c0_i32_9 = arith.constant 0 : i32
    %14 = arith.cmpi ne, %13, %c0_i32_9 : i32
    scf.if %14 {
      %c0_10 = arith.constant 0 : index
      %c0_11 = arith.constant 0 : index
      %15 = vector.load %arg5[%c0_10, %c0_11] : memref<8x128xf32, #tpu.memory_space<vmem>>, vector<8x128xf32>
      %16 = vector.shape_cast %15 : vector<8x128xf32> to vector<1x8x128xf32>
      %cst_12 = arith.constant dense<0.000000e+00> : vector<1xf32>
      %17 = vector.multi_reduction <add>, %16, %cst_12 [1, 2] : vector<1x8x128xf32> to vector<1xf32>
      %18 = vector.shape_cast %17 : vector<1xf32> to vector<1x1x1xf32>
      %19 = vector.extract %18[0, 0, 0] : f32 from vector<1x1x1xf32>
      %c0_13 = arith.constant 0 : index
      %c0_14 = arith.constant 0 : index
      %20 = memref.load %arg4[%c0_13, %c0_14] : memref<1x1xf32, #tpu.memory_space<smem>>
      memref.store %19, %arg4[%c0_13, %c0_14] : memref<1x1xf32, #tpu.memory_space<smem>>
    } else {
    }
    return
  }
  func.func @transform_0(%arg0: i32, %arg1: i32) -> (i32, i32) {
    %c1_i32 = arith.constant 1 : i32
    %0 = arith.muli %arg0, %c1_i32 : i32
    %1 = arith.addi %0, %arg1 : i32
    %c0_i32 = arith.constant 0 : i32
    %2 = arith.minsi %1, %c0_i32 : i32
    %c0_i32_0 = arith.constant 0 : i32
    %c0_i32_1 = arith.constant 0 : i32
    return %2, %c0_i32_0 : i32, i32
  }
  func.func @transform_1(%arg0: i32, %arg1: i32) -> (i32, i32) {
    %c1_i32 = arith.constant 1 : i32
    %0 = arith.muli %arg0, %c1_i32 : i32
    %1 = arith.addi %0, %arg1 : i32
    %c0_i32 = arith.constant 0 : i32
    %2 = arith.minsi %1, %c0_i32 : i32
    %c0_i32_0 = arith.constant 0 : i32
    %c0_i32_1 = arith.constant 0 : i32
    return %2, %c0_i32_0 : i32, i32
  }
  func.func @transform_2(%arg0: i32, %arg1: i32) -> (i32, i32) {
    %c0_i32 = arith.constant 0 : i32
    %c0_i32_0 = arith.constant 0 : i32
    return %arg0, %c0_i32 : i32, i32
  }
}

</mosaic_0001>

<llo_original>
// kernel: tpu_custom_call.1
$region0: #{tpu_custom_call.1}
  #allocation0 [shape = 'u32[]', space=smem, size = 0x4, offset = 0x4, fixed_abs, tag = 'smem constant byte address 0x4 - core index']
  #allocation1 [shape = 'u32[144,128]{1,0:T(1,128)}', space=vmem, size = 0x12000, scoped, tag = 'internal scratch']
  #allocation2 [shape = 'f32[8,128]{1,0:T(8,128)}', space=vmem, size = 0x1000, scoped, tag = 'scratch operand']
  %s0 = inlined_call_operand.hbm [shape: f32[16,128], index: 0, kind: input, shape index: {}]
  %s1 = inlined_call_operand.hbm [shape: f32[16,128], index: 1, kind: input, shape index: {}]
  %s2 = inlined_call_operand.hbm [shape: f32[1,1], index: 2, kind: output, shape index: {}]
  %s3 = sld [smem:[#allocation0]]
  $region34: #{tpu_custom_call.1} parent=0
    _
  %s5 = ssub.s32 1, %s3
  %s6 = scalar_select 0, %s5, %s3
  $region1: #{tpu_custom_call.1} parent=0
    #allocation3 [shape = 'u8[8192]{0}', space=vmem, size = 0x2000, scoped, tag = 'input window, operand 0, single buffered']
    #allocation4 [shape = 's32[1]{0}', space=sflag, size = 0x4, scoped, tag = 'scoped memory for tpu_custom_call.1']
    #allocation5 [shape = 's32[1]{0}', space=sflag, size = 0x4, scoped, tag = 'scoped memory for tpu_custom_call.1']
    #allocation6 [shape = 'u8[8192]{0}', space=vmem, size = 0x2000, scoped, tag = 'input window, operand 1, single buffered']
    #allocation7 [shape = 's32[1]{0}', space=sflag, size = 0x4, scoped, tag = 'scoped memory for tpu_custom_call.1']
    #allocation8 [shape = 'u8[512]{0}', space=smem, size = 0x200, scoped, tag = 'output window, operand 0, single buffered']
    %7 = vsyncpa [#allocation4], 0
    %8 = vsyncpa [#allocation7], 0
    %9 = vsyncpa [#allocation5], 0
    // Predicated region
    $region2: #{tpu_custom_call.1} parent=1 // pred_check
      _
    $region3: #{tpu_custom_call.1} parent=1 // pred_check_branch
      %11 = sbr.rel (0) target = $region5
    $region4: #{tpu_custom_call.1} parent=1 // pred_region
      %s12 = sadd.s32 0, 0
      %p13 = scmp.lt.s32.totalorder %s12, 0
      %s14 = scalar_select %p13, %s12, 0
      %s15 = smul.u32 2, %s14
      %s17 = ssub.s32 256, 256
      %18 = vsyncadd [#allocation4], %s17
      %s19 = smul.addr %s15, 128
      %s20 = scalar_lea.hbm %s0, %s19
      %s21 = sshll.u32 [#allocation3], 4
      %s22 = int_to_ptr.vmem [resolvable:$true] %s21
      %27 = dma.hbm_to_vmem [thread:$0]  %s20, 256, %s22, [#allocation4], 128, 128, 8
    $region5: #{tpu_custom_call.1} parent=1 // pred_fallthru
      _
    // Predicated region
    $region6: #{tpu_custom_call.1} parent=1 // pred_check
      _
    $region7: #{tpu_custom_call.1} parent=1 // pred_check_branch
      %29 = sbr.rel (0) target = $region9
    $region8: #{tpu_custom_call.1} parent=1 // pred_region
      %s30 = sadd.s32 0, 0
      %p31 = scmp.lt.s32.totalorder %s30, 0
      %s32 = scalar_select %p31, %s30, 0
      %s33 = smul.u32 2, %s32
      %s35 = ssub.s32 256, 256
      %36 = vsyncadd [#allocation7], %s35
      %s37 = smul.addr %s33, 128
      %s38 = scalar_lea.hbm %s1, %s37
      %s39 = sshll.u32 [#allocation6], 4
      %s40 = int_to_ptr.vmem [resolvable:$true] %s39
      %45 = dma.hbm_to_vmem [thread:$0]  %s38, 256, %s40, [#allocation7], 128, 128, 8
    $region9: #{tpu_custom_call.1} parent=1 // pred_fallthru
      _
    // Predicated region
    $region10: #{tpu_custom_call.1} parent=1 // pred_check
      _
    $region11: #{tpu_custom_call.1} parent=1 // pred_check_branch
      %47 = sbr.rel (0) target = $region13
    $region12: #{tpu_custom_call.1} parent=1 // pred_region
      %48 = dma.done [#allocation4], 256
    $region13: #{tpu_custom_call.1} parent=1 // pred_fallthru
      _
    // Predicated region
    $region14: #{tpu_custom_call.1} parent=1 // pred_check
      _
    $region15: #{tpu_custom_call.1} parent=1 // pred_check_branch
      %50 = sbr.rel (0) target = $region17
    $region16: #{tpu_custom_call.1} parent=1 // pred_region
      %51 = dma.done [#allocation7], 256
    $region17: #{tpu_custom_call.1} parent=1 // pred_fallthru
      _
    %s52 = sadd.s32 0, 0
    %p53 = scmp.lt.s32.totalorder %s52, 0
    %s54 = scalar_select %p53, %s52, 0
    %s55 = smul.u32 2, %s54
    %s56 = sadd.s32 0, 0
    %p57 = scmp.lt.s32.totalorder %s56, 0
    %s58 = scalar_select %p57, %s56, 0
    %s59 = smul.u32 2, %s58
    %p60 = scmp.eq.s32.totalorder 0, 0
    // Predicated region
    $region18: #{tpu_custom_call.1} parent=1 // pred_check
      %p61 = pneg %p60
    $region19: #{tpu_custom_call.1} parent=1 // pred_check_branch
      %63 = sbr.rel (%p61) target = $region21
    $region20: #{tpu_custom_call.1} parent=1 // pred_region
      %64 = vst [vmem:[#allocation2] sm:$0xff] 0.0
    $region21: #{tpu_custom_call.1} parent=1 // pred_fallthru
      _
    %v65 = vld [vmem:[#allocation3] sm:$0xff]
    %v66 = vld [vmem:[#allocation3 + $0x8] sm:$0xff]
    %v67 = vld [vmem:[#allocation6] sm:$0xff]
    %v68 = vld [vmem:[#allocation6 + $0x8] sm:$0xff]
    %v69 = vsub.f32 %v65, %v67
    %v70 = vsub.f32 %v66, %v68
    %v71 = vmul.f32 %v69, %v69
    %v72 = vmul.f32 %v70, %v70
    %v73 = vld [vmem:[#allocation2] sm:$0xff]
    %v74 = vadd.f32 %v71, %v72
    %v75 = vadd.f32 %v73, %v74
    %76 = vst [vmem:[#allocation2] sm:$0xff] %v75
    // Predicated region
    $region22: #{tpu_custom_call.1} parent=1 // pred_check
      %p77 = pneg %p60
    $region23: #{tpu_custom_call.1} parent=1 // pred_check_branch
      %79 = sbr.rel (%p77) target = $region25
    $region24: #{tpu_custom_call.1} parent=1 // pred_region
      %v80 = vld [vmem:[#allocation2] sm:$0xff]
      %81 = vadd.xlane.f32.xlu0 %v80
      %v82 = vpop.xlane.xlu0 %81
      %v83 = vrot.slane %v82, 4
      %v84 = vadd.f32 %v82, %v83
      %v85 = vrot.slane %v84, 2
      %v86 = vadd.f32 %v84, %v85
      %v87 = vrot.slane %v86, 1
      %v88 = vadd.f32 %v86, %v87
      %s89 = vtos %v88
      %s90 = scalar_lea.smem [#allocation8], 0
      %91 = sst [smem:[%s90]] %s89
    $region25: #{tpu_custom_call.1} parent=1 // pred_fallthru
      _
    // Predicated region
    $region26: #{tpu_custom_call.1} parent=1 // pred_check
      _
    $region27: #{tpu_custom_call.1} parent=1 // pred_check_branch
      %93 = sbr.rel (0) target = $region29
    $region28: #{tpu_custom_call.1} parent=1 // pred_region
      %s95 = ssub.s32 16, 16
      %96 = vsyncadd [#allocation5], %s95
      %99 = dma.smem_to_hbm [#allocation8], 16, %s2, [#allocation5]
    $region29: #{tpu_custom_call.1} parent=1 // pred_fallthru
      _
    // Predicated region
    $region30: #{tpu_custom_call.1} parent=1 // pred_check
      _
    $region31: #{tpu_custom_call.1} parent=1 // pred_check_branch
      %101 = sbr.rel (0) target = $region33
    $region32: #{tpu_custom_call.1} parent=1 // pred_region
      %102 = dma.done [#allocation5], 16
    $region33: #{tpu_custom_call.1} parent=1 // pred_fallthru
      _
    %103 = sfence
    %104 = vsyncpa [#allocation4], 1
    %105 = vsyncpa [#allocation7], 1
    %106 = vsyncpa [#allocation5], 1

</llo_original>
